<compile_context>
chip_gen: v7x
topology: tpu7x:2x2x1
jax: 0.10.0
libtpu: 0.0.40
codegen_flags: <defaults>
</compile_context>

<pallas_src>
import functools

import jax
import jax.numpy as jnp
from jax.experimental import pallas as pl
from jax.experimental.pallas import tpu as pltpu

_LANES = 128


def _mse_partial_kernel(x_ref, y_ref, o_ref, *,
                        block_rows, chunk_rows, total_elems, lanes):
    """Per-grid-step partial sum of squared differences.

    Streams the (block_rows, lanes) tile in chunk_rows-row chunks via a
    fori_loop (bounded vreg live ranges -> no spill for multi-MiB tiles),
    accumulating into an (8, lanes) f32 carry. Interior blocks do only
    sub/mul/add; the last (possibly partial) block additionally applies an
    element-level validity mask so unspecified data past the true end of the
    input never reaches the sum.
    """
    i = pl.program_id(0)
    last = pl.num_programs(0) - 1
    n_chunks = block_rows // chunk_rows
    zero = jnp.zeros((8, lanes), jnp.float32)

    def sq_chunk(g):
        off = pl.multiple_of(g * chunk_rows, chunk_rows)
        xd = x_ref[pl.ds(off, chunk_rows), :].astype(jnp.float32)
        yd = y_ref[pl.ds(off, chunk_rows), :].astype(jnp.float32)
        d = xd - yd
        return d * d

    def fold(sq):
        # (chunk_rows, lanes) -> (8, lanes): elementwise sum of contiguous
        # 8-row vreg groups (pure VALU, no cross-lane work).
        return jnp.sum(sq.reshape(chunk_rows // 8, 8, lanes), axis=0)

    @pl.when(i != last)
    def _():
        # Interior blocks: no masking at all.
        def body(g, acc):
            return acc + fold(sq_chunk(g))

        o_ref[...] = jax.lax.fori_loop(0, n_chunks, body, zero)

    @pl.when(i == last)
    def _():
        # Last block: element-level mask (flat index < total).
        base_row = i * block_rows

        def body(g, acc):
            sq = sq_chunk(g)
            row = (base_row + g * chunk_rows
                   + jax.lax.broadcasted_iota(jnp.int32, sq.shape, 0))
            lane = jax.lax.broadcasted_iota(jnp.int32, sq.shape, 1)
            ok = row * lanes + lane < total_elems
            return acc + fold(jnp.where(ok, sq, 0.0))

        o_ref[...] = jax.lax.fori_loop(0, n_chunks, body, zero)


def _ceil_to(v, m):
    return ((v + m - 1) // m) * m


def _choose_tiling(rows, itemsize, lanes):
    """Pick (block_rows, chunk_rows) for the streaming reduction."""
    rows8 = _ceil_to(max(rows, 1), 8)
    # ~4 MiB of each input per grid step (scaled by dtype width): amortizes the
    # ~0.35us per-step overhead; 2 inputs x 2 pipeline buffers stays ~16 MiB,
    # safe for v7x's 64 MiB per-TC VMEM (and trivially for v5e/v6e's 128 MiB).
    target_bytes = 4 << 20
    blk = _ceil_to(max(target_bytes // (lanes * itemsize), 8), 8)
    # Keep >= 4 grid steps for large inputs (>= 2 for medium ones) so the
    # "parallel" grid axis actually shards across both TensorCores on v7x.
    if rows8 >= 4 * 1024:
        blk = min(blk, _ceil_to(pl.cdiv(rows8, 4), 8))
    elif rows8 >= 16:
        blk = min(blk, _ceil_to(pl.cdiv(rows8, 2), 8))
    blk = min(blk, rows8)
    # Chunk size for the in-kernel fori_loop: largest power-of-two divisor
    # of blk up to 128 rows (keeps live vregs to a handful).
    chunk = 128
    while chunk > 8 and blk % chunk != 0:
        chunk //= 2
    return blk, chunk


def mse_loss(x, y, split="train", *, lanes=_LANES):
    """mean((x - y)**2) over all elements via a Pallas TPU kernel.

    Matches PyTorch nn.MSELoss() (reduction='mean'); the follow-up torch.mean
    on the already-scalar loss is a no-op.
    """
    del split  # unused; kept to mirror the PyTorch forward signature
    assert x.shape == y.shape, "input and reconstruction must have same shape"
    total = x.size
    assert total > 0

    xf = jnp.reshape(x, (-1,))
    yf = jnp.reshape(y, (-1,))

    # Stream a lane-dense (rows, 128) slab. For lane-aligned sizes the reshape
    # is free; otherwise pad the flat remainder (the in-kernel element mask
    # zeroes everything past `total`, so padded values never reach the sum).
    # TODO(synk): for non-lane-aligned sizes the jnp.pad is a full HBM copy of
    # both operands; a 1-D slab input would remove it.
    if total % lanes != 0:
        pad = lanes - (total % lanes)
        xf = jnp.pad(xf, (0, pad))
        yf = jnp.pad(yf, (0, pad))
    rows = xf.shape[0] // lanes
    x2 = xf.reshape(rows, lanes)
    y2 = yf.reshape(rows, lanes)

    itemsize = max(jnp.dtype(x.dtype).itemsize, jnp.dtype(y.dtype).itemsize)
    block_rows, chunk_rows = _choose_tiling(rows, itemsize, lanes)
    num_blocks = pl.cdiv(rows, block_rows)

    kernel = functools.partial(
        _mse_partial_kernel, block_rows=block_rows, chunk_rows=chunk_rows,
        total_elems=total, lanes=lanes)

    # Scoped VMEM: 2 inputs x 2 pipeline buffers x tile bytes + slack, clamped
    # to stay comfortably under v7x's 64 MiB per-TC physical VMEM.
    tile_bytes = block_rows * lanes * itemsize
    vmem_limit = int(min(max(4 * tile_bytes + (2 << 20), 16 << 20), 40 << 20))

    out_bytes = num_blocks * 8 * lanes * 4
    partials = pl.pallas_call(
        kernel,
        out_shape=jax.ShapeDtypeStruct((num_blocks * 8, lanes), jnp.float32),
        grid_spec=pltpu.PrefetchScalarGridSpec(
            num_scalar_prefetch=0,
            grid=(num_blocks,),
            in_specs=[
                pl.BlockSpec((block_rows, lanes), lambda i: (i, 0)),
                pl.BlockSpec((block_rows, lanes), lambda i: (i, 0)),
            ],
            out_specs=pl.BlockSpec((8, lanes), lambda i: (i, 0)),
        ),
        compiler_params=pltpu.CompilerParams(
            dimension_semantics=("parallel",),  # independent blocks -> megacore
            vmem_limit_bytes=vmem_limit,
        ),
        cost_estimate=pl.CostEstimate(
            flops=3 * total,
            transcendentals=0,
            bytes_accessed=int(x.nbytes) + int(y.nbytes) + out_bytes,
        ),
    )(x2, y2)

    # Tiny final reduction over per-block (8, 128) partials in plain JAX.
    return jnp.sum(partials, dtype=jnp.float32) / jnp.float32(total)


if __name__ == "__main__":
    key = jax.random.PRNGKey(0)
    k1, k2 = jax.random.split(key)
    # NCHW, like the PyTorch module's typical inputs.
    x = jax.random.normal(k1, (2, 4, 16, 16), dtype=jnp.float32)
    recon = jax.random.normal(k2, (2, 4, 16, 16), dtype=jnp.float32)

    loss = mse_loss(x, recon)
    jax.block_until_ready(loss)

    # Reference check in plain JAX.
    ref = jnp.mean((x - recon) ** 2)
    assert jnp.allclose(loss, ref, rtol=1e-5, atol=1e-6), (loss, ref)

    print("KERNEL_OK")
</pallas_src>

<mosaic_0001>
module attributes {stable_mosaic.version = 11 : i64} {
  func.func @_mse_partial_kernel(%arg0: i32, %arg1: memref<8x128xf32, #tpu.memory_space<vmem>>, %arg2: memref<8x128xf32, #tpu.memory_space<vmem>>, %arg3: memref<8x128xf32, #tpu.memory_space<vmem>>) attributes {dimension_semantics = [#tpu.dimension_semantics<parallel>], iteration_bounds = array<i64: 2>, scalar_prefetch = 0 : i64, scratch_operands = 0 : i64, tpu.core_type = #tpu.core_type<tc>, window_params = [{transform_indices = @transform_0, window_bounds = array<i64: 8, 128>}, {transform_indices = @transform_1, window_bounds = array<i64: 8, 128>}, {transform_indices = @transform_2, window_bounds = array<i64: 8, 128>}]} {
    %cst = arith.constant 0.000000e+00 : f32
    %0 = vector.broadcast %cst : f32 to vector<8x128xf32>
    %c1_i32 = arith.constant 1 : i32
    %1 = arith.cmpi ne, %arg0, %c1_i32 : i32
    %2 = arith.extui %1 : i1 to i32
    %c0_i32 = arith.constant 0 : i32
    %3 = arith.cmpi ne, %2, %c0_i32 : i32
    scf.if %3 {
      %c0_i32_2 = arith.constant 0 : i32
      %c8_i32 = arith.constant 8 : i32
      %7 = arith.muli %c0_i32_2, %c8_i32 : i32
      %8 = tpu.assume_multiple %7, 8 : i32
      %9 = arith.index_cast %8 : i32 to index
      %c0 = arith.constant 0 : index
      %10 = vector.load %arg1[%9, %c0] : memref<8x128xf32, #tpu.memory_space<vmem>>, vector<8x128xf32>
      %11 = arith.index_cast %8 : i32 to index
      %c0_3 = arith.constant 0 : index
      %12 = vector.load %arg2[%11, %c0_3] : memref<8x128xf32, #tpu.memory_space<vmem>>, vector<8x128xf32>
      %13 = arith.subf %10, %12 : vector<8x128xf32>
      %14 = arith.mulf %13, %13 : vector<8x128xf32>
      %15 = vector.shape_cast %14 : vector<8x128xf32> to vector<1x8x128xf32>
      %cst_4 = arith.constant dense<0.000000e+00> : vector<8x128xf32>
      %16 = vector.multi_reduction <add>, %15, %cst_4 [0] : vector<1x8x128xf32> to vector<8x128xf32>
      %17 = arith.addf %0, %16 : vector<8x128xf32>
      %c1_i32_5 = arith.constant 1 : i32
      %c0_6 = arith.constant 0 : index
      %c0_7 = arith.constant 0 : index
      %18 = vector.load %arg3[%c0_6, %c0_7] : memref<8x128xf32, #tpu.memory_space<vmem>>, vector<8x128xf32>
      tpu.vector_store %arg3[%c0_6, %c0_7], %17 {strides = array<i32>} : memref<8x128xf32, #tpu.memory_space<vmem>>, vector<8x128xf32>,
    } else {
    }
    %c1_i32_0 = arith.constant 1 : i32
    %4 = arith.cmpi eq, %arg0, %c1_i32_0 : i32
    %5 = arith.extui %4 : i1 to i32
    %c0_i32_1 = arith.constant 0 : i32
    %6 = arith.cmpi ne, %5, %c0_i32_1 : i32
    scf.if %6 {
      %c8_i32 = arith.constant 8 : i32
      %7 = arith.muli %arg0, %c8_i32 : i32
      %c0_i32_2 = arith.constant 0 : i32
      %c8_i32_3 = arith.constant 8 : i32
      %8 = arith.muli %c0_i32_2, %c8_i32_3 : i32
      %9 = tpu.assume_multiple %8, 8 : i32
      %10 = arith.index_cast %9 : i32 to index
      %c0 = arith.constant 0 : index
      %11 = vector.load %arg1[%10, %c0] : memref<8x128xf32, #tpu.memory_space<vmem>>, vector<8x128xf32>
      %12 = arith.index_cast %9 : i32 to index
      %c0_4 = arith.constant 0 : index
      %13 = vector.load %arg2[%12, %c0_4] : memref<8x128xf32, #tpu.memory_space<vmem>>, vector<8x128xf32>
      %14 = arith.subf %11, %13 : vector<8x128xf32>
      %15 = arith.mulf %14, %14 : vector<8x128xf32>
      %c8_i32_5 = arith.constant 8 : i32
      %16 = arith.muli %c0_i32_2, %c8_i32_5 : i32
      %17 = arith.addi %7, %16 : i32
      %18 = tpu.iota {dimensions = array<i32: 0>} : vector<8x128xi32>
      %19 = vector.broadcast %17 : i32 to vector<8x128xi32>
      %20 = arith.addi %19, %18 : vector<8x128xi32>
      %21 = tpu.iota {dimensions = array<i32: 1>} : vector<8x128xi32>
      %c128_i32 = arith.constant 128 : i32
      %22 = vector.broadcast %c128_i32 : i32 to vector<8x128xi32>
      %23 = arith.muli %20, %22 : vector<8x128xi32>
      %24 = arith.addi %23, %21 : vector<8x128xi32>
      %c2048_i32 = arith.constant 2048 : i32
      %25 = vector.broadcast %c2048_i32 : i32 to vector<8x128xi32>
      %26 = arith.cmpi slt, %24, %25 : vector<8x128xi32>
      %cst_6 = arith.constant 0.000000e+00 : f32
      %27 = vector.broadcast %cst_6 : f32 to vector<8x128xf32>
      %28 = arith.select %26, %15, %27 : vector<8x128xi1>, vector<8x128xf32>
      %29 = vector.shape_cast %28 : vector<8x128xf32> to vector<1x8x128xf32>
      %cst_7 = arith.constant dense<0.000000e+00> : vector<8x128xf32>
      %30 = vector.multi_reduction <add>, %29, %cst_7 [0] : vector<1x8x128xf32> to vector<8x128xf32>
      %31 = arith.addf %0, %30 : vector<8x128xf32>
      %c1_i32_8 = arith.constant 1 : i32
      %c0_9 = arith.constant 0 : index
      %c0_10 = arith.constant 0 : index
      %32 = vector.load %arg3[%c0_9, %c0_10] : memref<8x128xf32, #tpu.memory_space<vmem>>, vector<8x128xf32>
      tpu.vector_store %arg3[%c0_9, %c0_10], %31 {strides = array<i32>} : memref<8x128xf32, #tpu.memory_space<vmem>>, vector<8x128xf32>,
    } else {
    }
    return
  }
  func.func @transform_0(%arg0: i32) -> (i32, i32) {
    %c0_i32 = arith.constant 0 : i32
    %c0_i32_0 = arith.constant 0 : i32
    return %arg0, %c0_i32 : i32, i32
  }
  func.func @transform_1(%arg0: i32) -> (i32, i32) {
    %c0_i32 = arith.constant 0 : i32
    %c0_i32_0 = arith.constant 0 : i32
    return %arg0, %c0_i32 : i32, i32
  }
  func.func @transform_2(%arg0: i32) -> (i32, i32) {
    %c0_i32 = arith.constant 0 : i32
    %c0_i32_0 = arith.constant 0 : i32
    return %arg0, %c0_i32 : i32, i32
  }
}

</mosaic_0001>

<llo_original>
// kernel: tpu_custom_call.1
$region0: #{tpu_custom_call.1}
  #allocation0 [shape = 'u32[]', space=smem, size = 0x4, offset = 0x4, fixed_abs, tag = 'smem constant byte address 0x4 - core index']
  #allocation1 [shape = 'u32[144,128]{1,0:T(1,128)}', space=vmem, size = 0x12000, scoped, tag = 'internal scratch']
  %s0 = inlined_call_operand.hbm [shape: f32[16,128], index: 0, kind: input, shape index: {}]
  %s1 = inlined_call_operand.hbm [shape: f32[16,128], index: 1, kind: input, shape index: {}]
  %s2 = inlined_call_operand.hbm [shape: f32[16,128], index: 2, kind: output, shape index: {}]
  %s3 = sld [smem:[#allocation0]]
  $region57: #{tpu_custom_call.1} parent=0
    _
  %s5 = ssub.s32 1, %s3
  %s6 = scalar_select 0, %s5, %s3
  $region1: #{tpu_custom_call.1} parent=0
    #allocation2 [shape = 'u8[8192]{0}', space=vmem, size = 0x2000, scoped, tag = 'input window, operand 0']
    #allocation3 [shape = 's32[2]{0}', space=sflag, size = 0x8, scoped, tag = 'scoped memory for tpu_custom_call.1']
    #allocation4 [shape = 's32[2]{0}', space=sflag, size = 0x8, scoped, tag = 'scoped memory for tpu_custom_call.1']
    #allocation5 [shape = 'u8[8192]{0}', space=vmem, size = 0x2000, scoped, tag = 'input window, operand 1']
    #allocation6 [shape = 's32[2]{0}', space=sflag, size = 0x8, scoped, tag = 'scoped memory for tpu_custom_call.1']
    #allocation7 [shape = 'u8[8192]{0}', space=vmem, size = 0x2000, scoped, tag = 'output window, operand 0']
    %7 = vsyncpa [#allocation3], 0
    %s8 = scalar_lea.sflag [#allocation3], 1
    %9 = vsyncpa %s8, 0
    %10 = vsyncpa [#allocation6], 0
    %s11 = scalar_lea.sflag [#allocation6], 1
    %12 = vsyncpa %s11, 0
    %13 = vsyncpa [#allocation4], 0
    %s14 = scalar_lea.sflag [#allocation4], 1
    %15 = vsyncpa %s14, 0
    loop: start=0, step=1, limit=4
    $region2: #{tpu_custom_call.1} parent=1 // loop_pre_header
      _
    $region3: #{tpu_custom_call.1} parent=1 // loop_header
      %s17 = sphi 0, %s21
      %p18 = scmp.ge.s32.totalorder %s17, 4
      %s27 = sphi 0, %s29
      %s30 = sphi 0, %s27
      %s31 = sphi 0, %s30
      %s47 = sphi 0, %s31
      %s53 = sphi 0, %s55
      %s56 = sphi 0, %s53
      %s57 = sphi 0, %s56
      %s73 = sphi 0, %s57
      %s79 = sphi 0, %s81
      %s82 = sphi 0, %s79
      %s83 = sphi 0, %s82
      %s99 = sphi 0, %s83
    $region4: #{tpu_custom_call.1} parent=1 // loop_header_branch
      %20 = sbr.rel (%p18) target = $region8
    $region5: #{tpu_custom_call.1} parent=1 // loop_body
      %s22 = ssub.s32 %s17, 1
      %s23 = ssub.s32 %s17, 2
      %s24 = sadd.s32 %s17, 1
      %s25 = ssub.s32 %s17, %s24
      %p26 = scmp.eq.s32.totalorder %s25, 0
      %s28 = sadd.s32 %s27, 1
      %s29 = scalar_select %p26, %s27, %s28
      %p32 = pneg %p26
      %p33 = scmp.eq.s32.totalorder %s17, 1
      %p34 = por %p32, %p33
      %p35 = scmp.ne.s32.totalorder %s27, %s30
      %p36 = scmp.eq.s32.totalorder %s17, 0
      %p37 = por %p35, %p36
      %p38 = scmp.ne.s32.totalorder %s27, %s30
      %p39 = scmp.eq.s32.totalorder %s22, 1
      %p40 = por %p38, %p39
      %p41 = scmp.ne.s32.totalorder %s30, %s31
      %p42 = scmp.eq.s32.totalorder %s22, 0
      %p43 = por %p41, %p42
      %p44 = scmp.ne.s32.totalorder %s30, %s31
      %p45 = scmp.eq.s32.totalorder %s23, 1
      %p46 = por %p44, %p45
      %p48 = scmp.ne.s32.totalorder %s31, %s47
      %p49 = scmp.eq.s32.totalorder %s23, 0
      %p50 = por %p48, %p49
      %s51 = ssub.s32 %s17, %s24
      %p52 = scmp.eq.s32.totalorder %s51, 0
      %s54 = sadd.s32 %s53, 1
      %s55 = scalar_select %p52, %s53, %s54
      %p58 = pneg %p52
      %p59 = scmp.eq.s32.totalorder %s17, 1
      %p60 = por %p58, %p59
      %p61 = scmp.ne.s32.totalorder %s53, %s56
      %p62 = scmp.eq.s32.totalorder %s17, 0
      %p63 = por %p61, %p62
      %p64 = scmp.ne.s32.totalorder %s53, %s56
      %p65 = scmp.eq.s32.totalorder %s22, 1
      %p66 = por %p64, %p65
      %p67 = scmp.ne.s32.totalorder %s56, %s57
      %p68 = scmp.eq.s32.totalorder %s22, 0
      %p69 = por %p67, %p68
      %p70 = scmp.ne.s32.totalorder %s56, %s57
      %p71 = scmp.eq.s32.totalorder %s23, 1
      %p72 = por %p70, %p71
      %p74 = scmp.ne.s32.totalorder %s57, %s73
      %p75 = scmp.eq.s32.totalorder %s23, 0
      %p76 = por %p74, %p75
      %s77 = ssub.s32 %s17, %s24
      %p78 = scmp.eq.s32.totalorder %s77, 0
      %s80 = sadd.s32 %s79, 1
      %s81 = scalar_select %p78, %s79, %s80
      %p84 = pneg %p78
      %p85 = scmp.eq.s32.totalorder %s17, 1
      %p86 = por %p84, %p85
      %p87 = scmp.ne.s32.totalorder %s79, %s82
      %p88 = scmp.eq.s32.totalorder %s17, 0
      %p89 = por %p87, %p88
      %p90 = scmp.ne.s32.totalorder %s79, %s82
      %p91 = scmp.eq.s32.totalorder %s22, 1
      %p92 = por %p90, %p91
      %p93 = scmp.ne.s32.totalorder %s82, %s83
      %p94 = scmp.eq.s32.totalorder %s22, 0
      %p95 = por %p93, %p94
      %p96 = scmp.ne.s32.totalorder %s82, %s83
      %p97 = scmp.eq.s32.totalorder %s23, 1
      %p98 = por %p96, %p97
      %p100 = scmp.ne.s32.totalorder %s83, %s99
      %p101 = scmp.eq.s32.totalorder %s23, 0
      %p102 = por %p100, %p101
      %p103 = scmp.le.s32.totalorder 1, %s17
      %p104 = scmp.lt.s32.totalorder %s17, 3
      %p105 = pnand %p103, %p104
      %p106 = pneg %p105
      // Predicated region
      $region9: #{tpu_custom_call.1} parent=5 // pred_check
        _
      $region10: #{tpu_custom_call.1} parent=5 // pred_check_branch
        %108 = sbr.rel (%p105) target = $region12
      $region11: #{tpu_custom_call.1} parent=5 // pred_region
        %s109 = ssub.s32 %s17, 1
      $region12: #{tpu_custom_call.1} parent=5 // pred_fallthru
        _
      %p110 = scmp.lt.s32.totalorder %s17, 2
      // Predicated region
      $region13: #{tpu_custom_call.1} parent=5 // pred_check
        %p111 = pneg %p110
      $region14: #{tpu_custom_call.1} parent=5 // pred_check_branch
        %113 = sbr.rel (%p111) target = $region16
      $region15: #{tpu_custom_call.1} parent=5 // pred_region
        // Predicated region
        $region17: #{tpu_custom_call.1} parent=15 // pred_check
          %p114 = pneg %p37
        $region18: #{tpu_custom_call.1} parent=15 // pred_check_branch
          %116 = sbr.rel (%p114) target = $region20
        $region19: #{tpu_custom_call.1} parent=15 // pred_region
          %s117 = sand.u32 %s27, 1
          %s118 = scalar_lea.sflag [#allocation3], %s117
          %s119 = sand.u32 %s27, 1
          %s120 = smul.addr %s119, 8
          %s121 = scalar_lea.vmem [#allocation2], %s120
          %s123 = ssub.s32 128, 128
          %124 = vsyncadd %s118, %s123
          %s125 = smul.addr %s17, 128
          %s126 = scalar_lea.hbm %s0, %s125
          %s128 = sshll.u32 %s121, 4
          %s129 = int_to_ptr.vmem [resolvable:$true] %s128
          %131 = dma.hbm_to_vmem [thread:$0]  %s126, 128, %s129, %s118
        $region20: #{tpu_custom_call.1} parent=15 // pred_fallthru
          _
        // Predicated region
        $region21: #{tpu_custom_call.1} parent=15 // pred_check
          %p132 = pneg %p63
        $region22: #{tpu_custom_call.1} parent=15 // pred_check_branch
          %134 = sbr.rel (%p132) target = $region24
        $region23: #{tpu_custom_call.1} parent=15 // pred_region
          %s135 = sand.u32 %s53, 1
          %s136 = scalar_lea.sflag [#allocation6], %s135
          %s137 = sand.u32 %s53, 1
          %s138 = smul.addr %s137, 8
          %s139 = scalar_lea.vmem [#allocation5], %s138
          %s141 = ssub.s32 128, 128
          %142 = vsyncadd %s136, %s141
          %s143 = smul.addr %s17, 128
          %s144 = scalar_lea.hbm %s1, %s143
          %s146 = sshll.u32 %s139, 4
          %s147 = int_to_ptr.vmem [resolvable:$true] %s146
          %149 = dma.hbm_to_vmem [thread:$0]  %s144, 128, %s147, %s136
        $region24: #{tpu_custom_call.1} parent=15 // pred_fallthru
          _
      $region16: #{tpu_custom_call.1} parent=5 // pred_fallthru
        _
      %p150 = scmp.le.s32.totalorder 1, %s17
      %p151 = scmp.lt.s32.totalorder %s17, 3
      %p152 = pnand %p150, %p151
      %p153 = pneg %p152
      // Predicated region
      $region25: #{tpu_custom_call.1} parent=5 // pred_check
        _
      $region26: #{tpu_custom_call.1} parent=5 // pred_check_branch
        %155 = sbr.rel (%p152) target = $region28
      $region27: #{tpu_custom_call.1} parent=5 // pred_region
        %s156 = ssub.s32 %s17, 1
        %s157 = sand.u32 %s30, 1
        %s158 = scalar_lea.sflag [#allocation3], %s157
        %s159 = sand.u32 %s30, 1
        %s160 = smul.addr %s159, 8
        %s161 = scalar_lea.vmem [#allocation2], %s160
        // Predicated region
        $region29: #{tpu_custom_call.1} parent=27 // pred_check
          %p162 = pneg %p43
        $region30: #{tpu_custom_call.1} parent=27 // pred_check_branch
          %164 = sbr.rel (%p162) target = $region32
        $region31: #{tpu_custom_call.1} parent=27 // pred_region
          %165 = dma.done %s158, 128
        $region32: #{tpu_custom_call.1} parent=27 // pred_fallthru
          _
        %s166 = sand.u32 %s56, 1
        %s167 = scalar_lea.sflag [#allocation6], %s166
        %s168 = sand.u32 %s56, 1
        %s169 = smul.addr %s168, 8
        %s170 = scalar_lea.vmem [#allocation5], %s169
        // Predicated region
        $region33: #{tpu_custom_call.1} parent=27 // pred_check
          %p171 = pneg %p69
        $region34: #{tpu_custom_call.1} parent=27 // pred_check_branch
          %173 = sbr.rel (%p171) target = $region36
        $region35: #{tpu_custom_call.1} parent=27 // pred_region
          %174 = dma.done %s167, 128
        $region36: #{tpu_custom_call.1} parent=27 // pred_fallthru
          _
        %s175 = sand.u32 %s30, 1
        %s176 = scalar_lea.sflag [#allocation3], %s175
        %s177 = sand.u32 %s30, 1
        %s178 = smul.addr %s177, 8
        %s179 = scalar_lea.vmem [#allocation2], %s178
        %p180 = pneg %p43
        %p181 = pneg %p40
        %s182 = sand.u32 %s56, 1
        %s183 = scalar_lea.sflag [#allocation6], %s182
        %s184 = sand.u32 %s56, 1
        %s185 = smul.addr %s184, 8
        %s186 = scalar_lea.vmem [#allocation5], %s185
        %p187 = pneg %p69
        %p188 = pneg %p66
        %p189 = pneg %p95
        %p190 = pneg %p92
        %s191 = sand.u32 %s82, 1
        %s192 = scalar_lea.sflag [#allocation4], %s191
        %s193 = sand.u32 %s82, 1
        %s194 = smul.addr %s193, 8
        %s195 = scalar_lea.vmem [#allocation7], %s194
        %p196 = scmp.ne.s32.totalorder %s22, 1
        // Predicated region
        $region37: #{tpu_custom_call.1} parent=27 // pred_check
          %p197 = pneg %p196
        $region38: #{tpu_custom_call.1} parent=27 // pred_check_branch
          %199 = sbr.rel (%p197) target = $region40
        $region39: #{tpu_custom_call.1} parent=27 // pred_region
          %v200 = vld [vmem:[%s161] sm:$0xff]
          %v201 = vld [vmem:[%s170] sm:$0xff]
          %v202 = vsub.f32 %v200, %v201
          %v203 = vmul.f32 %v202, %v202
          %v204 = vadd.f32 %v203, 0.0
          %v205 = vadd.f32 %v204, 0.0
          %206 = vst [vmem:[%s195] sm:$0xff] %v205
        $region40: #{tpu_custom_call.1} parent=27 // pred_fallthru
          _
        %p207 = scmp.eq.s32.totalorder %s22, 1
        // Predicated region
        $region41: #{tpu_custom_call.1} parent=27 // pred_check
          %p208 = pneg %p207
        $region42: #{tpu_custom_call.1} parent=27 // pred_check_branch
          %210 = sbr.rel (%p208) target = $region44
        $region43: #{tpu_custom_call.1} parent=27 // pred_region
          %s211 = smul.u32 %s22, 8
          %v212 = vld [vmem:[%s161] sm:$0xff]
          %v213 = vld [vmem:[%s170] sm:$0xff]
          %v214 = vsub.f32 %v212, %v213
          %v215 = vmul.f32 %v214, %v214
          %v216 = vlaneseq
          %v217 = vshrl.u32 %v216, 7
          %v218 = vstv %s211
          %v219 = vadd.s32 %v218, %v217
          %v220 = vlaneseq
          %v221 = vand.u32 %v220, 127
          %v222 = vmul.u32 %v219, 128
          %v223 = vadd.s32 %v222, %v221
          %vm224 = vcmp.lt.s32.totalorder %v223, 2048
          %v225 = vsel %vm224, %v215, 0.0
          %v226 = vadd.f32 %v225, 0.0
          %v227 = vadd.f32 %v226, 0.0
          %228 = vst [vmem:[%s195] sm:$0xff] %v227
        $region44: #{tpu_custom_call.1} parent=27 // pred_fallthru
          _
        %s229 = sand.u32 %s82, 1
        %s230 = scalar_lea.sflag [#allocation4], %s229
        %s231 = sand.u32 %s82, 1
        %s232 = smul.addr %s231, 8
        %s233 = scalar_lea.vmem [#allocation7], %s232
        // Predicated region
        $region45: #{tpu_custom_call.1} parent=27 // pred_check
          %p234 = pneg %p92
        $region46: #{tpu_custom_call.1} parent=27 // pred_check_branch
          %236 = sbr.rel (%p234) target = $region48
        $region47: #{tpu_custom_call.1} parent=27 // pred_region
          %s238 = ssub.s32 128, 128
          %239 = vsyncadd %s230, %s238
          %s240 = smul.addr %s22, 128
          %s241 = scalar_lea.hbm %s2, %s240
          %s243 = sshll.u32 %s233, 4
          %s244 = int_to_ptr.vmem [resolvable:$true] %s243
          %246 = dma.vmem_to_hbm [thread:$0]  %s244, 128, %s241, %s230
        $region48: #{tpu_custom_call.1} parent=27 // pred_fallthru
          _
      $region28: #{tpu_custom_call.1} parent=5 // pred_fallthru
        _
      %p247 = scmp.le.s32.totalorder 2, %s17
      // Predicated region
      $region49: #{tpu_custom_call.1} parent=5 // pred_check
        %p248 = pneg %p247
      $region50: #{tpu_custom_call.1} parent=5 // pred_check_branch
        %250 = sbr.rel (%p248) target = $region52
      $region51: #{tpu_custom_call.1} parent=5 // pred_region
        %s251 = ssub.s32 %s17, 2
        // Predicated region
        $region53: #{tpu_custom_call.1} parent=51 // pred_check
          %p252 = pneg %p98
        $region54: #{tpu_custom_call.1} parent=51 // pred_check_branch
          %254 = sbr.rel (%p252) target = $region56
        $region55: #{tpu_custom_call.1} parent=51 // pred_region
          %s255 = sand.u32 %s83, 1
          %s256 = scalar_lea.sflag [#allocation4], %s255
          %s257 = sand.u32 %s83, 1
          %s258 = smul.addr %s257, 8
          %s259 = scalar_lea.vmem [#allocation7], %s258
          %260 = dma.done %s256, 128
        $region56: #{tpu_custom_call.1} parent=51 // pred_fallthru
          _
      $region52: #{tpu_custom_call.1} parent=5 // pred_fallthru
        _
    $region6: #{tpu_custom_call.1} parent=1 // loop_footer
      %s21 = sadd.s32 1, %s17
    $region7: #{tpu_custom_call.1} parent=1 // loop_footer_branch
      %16 = sbr.rel target = $region3
    $region8: #{tpu_custom_call.1} parent=1 // loop_exit
      _
    %261 = vsyncpa [#allocation3], 1
    %s262 = scalar_lea.sflag [#allocation3], 1
    %263 = vsyncpa %s262, 1
    %264 = vsyncpa [#allocation6], 1
    %s265 = scalar_lea.sflag [#allocation6], 1
    %266 = vsyncpa %s265, 1
    %267 = vsyncpa [#allocation4], 1
    %s268 = scalar_lea.sflag [#allocation4], 1
    %269 = vsyncpa %s268, 1

</llo_original>
